<compile_context>
chip_gen: v7x
topology: tpu7x:2x2x1
jax: 0.10.0
libtpu: 0.0.40
codegen_flags: <defaults>
</compile_context>

<pallas_src>
import functools

import jax
import jax.numpy as jnp
from jax.experimental import pallas as pl
from jax.experimental.pallas import tpu as pltpu

_IN = 28 * 28     # 784
_HID = 128        # hidden width padded 64 -> 128 (lane-dense)
_OUT = 128        # class width padded 10 -> 128 (lane-dense, unmasked stores)
_NCLS = 10
_NEG = -1e30      # logit fill for padded classes (exp underflows to exactly 0)

# Sized for v7x's 64 MiB/TC physical VMEM; plenty for TB<=4096 on all chips.
_VMEM_LIMIT_BYTES = 48 * 1024 * 1024


def _round_up(n, m):
    return -(-n // m) * m


def _mlp_kernel(x_ref, w1_ref, b1_ref, w2_ref, b2_ref, w3_ref, b3_ref,
                w4_ref, b4_ref, out_ref):
    # Weights may be pre-cast to bf16 (MXU path); activations are cast only at
    # the matmul.  Accumulation and all elementwise math stay in f32.
    def matmul(a, w_ref):
        w = w_ref[...]
        return jnp.dot(a.astype(w.dtype), w, preferred_element_type=jnp.float32)

    x = x_ref[...]
    h = jnp.maximum(matmul(x, w1_ref) + b1_ref[...], 0.0)
    h = jnp.maximum(matmul(h, w2_ref) + b2_ref[...], 0.0)
    h = jnp.maximum(matmul(h, w3_ref) + b3_ref[...], 0.0)
    logits = matmul(h, w4_ref) + b4_ref[...]

    # Numerically stable log_softmax over dim=1.  Padded classes carry
    # b4 = -1e30, so they never win the max and exp() underflows to 0.
    m = jnp.max(logits, axis=1, keepdims=True)
    shifted = logits - m
    lse = jnp.log(jnp.sum(jnp.exp(shifted), axis=1, keepdims=True))
    out_ref[...] = (shifted - lse).astype(out_ref.dtype)


def prepare_params(params, *, use_bf16=True):
    """Pad weights/biases ONCE to lane-dense widths and (optionally) pre-cast
    the weights to bf16 for the MXU.  Doing this outside net_forward removes
    8 small XLA pad ops from every forward call and the per-grid-step VPU cast
    of the 784x128 w1 tile; biases stay f32 (all elementwise math is f32)."""
    wdt = jnp.bfloat16 if use_bf16 else jnp.float32
    hp, cp = _HID - 64, _OUT - _NCLS
    return {
        "w1": jnp.pad(params["w1"], ((0, 0), (0, hp))).astype(wdt),
        "b1": jnp.pad(params["b1"], ((0, 0), (0, hp))),
        "w2": jnp.pad(params["w2"], ((0, hp), (0, hp))).astype(wdt),
        "b2": jnp.pad(params["b2"], ((0, 0), (0, hp))),
        "w3": jnp.pad(params["w3"], ((0, hp), (0, hp))).astype(wdt),
        "b3": jnp.pad(params["b3"], ((0, 0), (0, hp))),
        "w4": jnp.pad(params["w4"], ((0, hp), (0, cp))).astype(wdt),
        "b4": jnp.pad(params["b4"], ((0, 0), (0, cp)), constant_values=_NEG),
    }


@functools.partial(jax.jit, static_argnames=("tb", "padded_output"))
def net_forward(x, prepared, *, tb=2048, padded_output=False):
    """x: [B, 784] (f32 or bf16, straight from the producer).
    prepared: output of prepare_params().  Returns log_softmax [B, 10] f32,
    or the padded (Bp, 128) block if padded_output=True (caller slices/fuses)."""
    B, F = x.shape
    assert F == _IN

    # Row alignment: 8 rows for 4-byte x, 16 for bf16 (sublane packing).
    row_align = max(8, 32 // x.dtype.itemsize)

    # Batch tile: big enough to amortize the ~0.35 us per-grid-step overhead
    # (the kernel is HBM-bandwidth bound on the x stream), small enough that
    # the double-buffered x tile + output + f32 temporaries fit the 48 MiB
    # vmem limit.  Do not push tb past 4096 (v7x has 64 MiB/TC).
    B_aligned = _round_up(B, row_align)
    TB = _round_up(min(tb, B_aligned), row_align)
    # Guarantee >= 2 grid steps whenever the batch allows it, so that on v7x
    # dimension_semantics=("parallel",) shards the grid across both
    # TensorCores (no effect on single-TC v5e/v6e).
    if TB >= B_aligned and B_aligned >= 2 * row_align:
        TB = _round_up(-(-B_aligned // 2), row_align)
    Bp = _round_up(B, TB)
    if Bp != B:
        x = jnp.pad(x, ((0, Bp - B), (0, 0)))   # zero rows, dropped by caller

    # Weights/biases use a constant index_map: DMA'd once, resident in VMEM
    # across all grid steps (~0.3 MiB total in bf16).
    resident = lambda shape: pl.BlockSpec(shape, lambda i: (0, 0))

    weight_bytes = sum(int(v.size) * v.dtype.itemsize for v in prepared.values())
    cost = pl.CostEstimate(
        flops=2 * Bp * (_IN * _HID + 2 * _HID * _HID + _HID * _OUT),
        transcendentals=Bp * (_OUT + 1),
        bytes_accessed=Bp * (F * x.dtype.itemsize + _OUT * 4) + weight_bytes,
    )

    out = pl.pallas_call(
        _mlp_kernel,
        out_shape=jax.ShapeDtypeStruct((Bp, _OUT), jnp.float32),
        grid=(Bp // TB,),
        in_specs=[
            pl.BlockSpec((TB, F), lambda i: (i, 0)),        # x: streamed tiles
            resident((F, _HID)), resident((1, _HID)),       # fc1
            resident((_HID, _HID)), resident((1, _HID)),    # fc2
            resident((_HID, _HID)), resident((1, _HID)),    # fc3
            resident((_HID, _OUT)), resident((1, _OUT)),    # fc4
        ],
        out_specs=pl.BlockSpec((TB, _OUT), lambda i: (i, 0)),
        compiler_params=pltpu.CompilerParams(
            dimension_semantics=("parallel",),
            vmem_limit_bytes=_VMEM_LIMIT_BYTES),
        cost_estimate=cost,
    )(x, prepared["w1"], prepared["b1"], prepared["w2"], prepared["b2"],
      prepared["w3"], prepared["b3"], prepared["w4"], prepared["b4"])

    if padded_output:
        # Skip the second HBM pass over the output: the consumer slices
        # [:B, :10] (or fuses argmax / NLL) itself.  Padded classes hold
        # ~-1e30; padded rows are junk.
        return out
    return out[:B, :_NCLS]


def init_params(key):
    """Deterministic init mirroring nn.Linear's U(-1/sqrt(fan_in), +)."""
    dims = [(_IN, 64), (64, 64), (64, 64), (64, _NCLS)]
    params = {}
    keys = jax.random.split(key, 2 * len(dims))
    for i, (fan_in, fan_out) in enumerate(dims):
        bound = 1.0 / jnp.sqrt(float(fan_in))
        params[f"w{i+1}"] = jax.random.uniform(
            keys[2 * i], (fan_in, fan_out), jnp.float32, -bound, bound)
        params[f"b{i+1}"] = jax.random.uniform(
            keys[2 * i + 1], (1, fan_out), jnp.float32, -bound, bound)
    return params


def _ref_forward(x, params):
    h = jax.nn.relu(x @ params["w1"] + params["b1"])
    h = jax.nn.relu(h @ params["w2"] + params["b2"])
    h = jax.nn.relu(h @ params["w3"] + params["b3"])
    logits = h @ params["w4"] + params["b4"]
    return jax.nn.log_softmax(logits, axis=1)


if __name__ == "__main__":
    key = jax.random.PRNGKey(0)
    k_param, k_x, k_x2 = jax.random.split(key, 3)
    params = init_params(k_param)
    prep_bf16 = prepare_params(params)                   # default: bf16 MXU path
    prep_f32 = prepare_params(params, use_bf16=False)    # exact f32 path

    # Small batch, f32 weights: single grid step, tight tolerance.
    B = 8
    x = jax.random.normal(k_x, (B, _IN), jnp.float32)
    ref = _ref_forward(x, params)
    out = jax.block_until_ready(net_forward(x, prep_f32))
    assert out.shape == (B, _NCLS)
    assert jnp.allclose(out, ref, atol=1e-4, rtol=1e-4)

    # Default bf16-MXU path (recommended on v5e/v6e/v7x): looser tolerance.
    out_bf16 = jax.block_until_ready(net_forward(x, prep_bf16))
    assert jnp.allclose(out_bf16, ref, atol=0.1, rtol=0.1)

    # bf16 input stream (as if the data producer emits bf16): no wrapper cast.
    x_bf16 = x.astype(jnp.bfloat16)
    out_xb = jax.block_until_ready(net_forward(x_bf16, prep_bf16))
    assert jnp.allclose(out_xb, ref, atol=0.2, rtol=0.2)

    # Ragged batch: multi-step grid + row padding (B=300, TB=128 -> grid=(3,)).
    B2 = 300
    x2 = jax.random.normal(k_x2, (B2, _IN), jnp.float32)
    ref2 = _ref_forward(x2, params)
    out2 = jax.block_until_ready(net_forward(x2, prep_f32, tb=128))
    assert out2.shape == (B2, _NCLS)
    assert jnp.allclose(out2, ref2, atol=1e-4, rtol=1e-4)

    # Default tb with megacore-friendly auto-split (grid=(2,)) and
    # padded_output=True to avoid the extra [:B, :10] HBM pass.
    out_pad = jax.block_until_ready(
        net_forward(x2, prep_f32, padded_output=True))
    assert out_pad.shape[1] == _OUT
    assert jnp.allclose(out_pad[:B2, :_NCLS], ref2, atol=1e-4, rtol=1e-4)

    print("KERNEL_OK")
</pallas_src>

<mosaic_0001>
module attributes {stable_mosaic.version = 11 : i64} {
  func.func @_mlp_kernel(%arg0: i32, %arg1: memref<8x784xf32, #tpu.memory_space<vmem>>, %arg2: memref<784x128xf32, #tpu.memory_space<vmem>>, %arg3: memref<1x128xf32, #tpu.memory_space<vmem>>, %arg4: memref<128x128xf32, #tpu.memory_space<vmem>>, %arg5: memref<1x128xf32, #tpu.memory_space<vmem>>, %arg6: memref<128x128xf32, #tpu.memory_space<vmem>>, %arg7: memref<1x128xf32, #tpu.memory_space<vmem>>, %arg8: memref<128x128xf32, #tpu.memory_space<vmem>>, %arg9: memref<1x128xf32, #tpu.memory_space<vmem>>, %arg10: memref<8x128xf32, #tpu.memory_space<vmem>>) attributes {dimension_semantics = [#tpu.dimension_semantics<parallel>], iteration_bounds = array<i64: 1>, scalar_prefetch = 0 : i64, scratch_operands = 0 : i64, tpu.core_type = #tpu.core_type<tc>, window_params = [{transform_indices = @transform_0, window_bounds = array<i64: 8, 784>}, {pipeline_mode = #tpu.pipeline_mode<synchronous>, transform_indices = @transform_1, window_bounds = array<i64: 784, 128>}, {pipeline_mode = #tpu.pipeline_mode<synchronous>, transform_indices = @transform_2, window_bounds = array<i64: 1, 128>}, {pipeline_mode = #tpu.pipeline_mode<synchronous>, transform_indices = @transform_3, window_bounds = array<i64: 128, 128>}, {pipeline_mode = #tpu.pipeline_mode<synchronous>, transform_indices = @transform_4, window_bounds = array<i64: 1, 128>}, {pipeline_mode = #tpu.pipeline_mode<synchronous>, transform_indices = @transform_5, window_bounds = array<i64: 128, 128>}, {pipeline_mode = #tpu.pipeline_mode<synchronous>, transform_indices = @transform_6, window_bounds = array<i64: 1, 128>}, {pipeline_mode = #tpu.pipeline_mode<synchronous>, transform_indices = @transform_7, window_bounds = array<i64: 128, 128>}, {pipeline_mode = #tpu.pipeline_mode<synchronous>, transform_indices = @transform_8, window_bounds = array<i64: 1, 128>}, {transform_indices = @transform_9, window_bounds = array<i64: 8, 128>}]} {
    %c0 = arith.constant 0 : index
    %c0_0 = arith.constant 0 : index
    %0 = vector.load %arg1[%c0, %c0_0] : memref<8x784xf32, #tpu.memory_space<vmem>>, vector<8x784xf32>
    %c0_1 = arith.constant 0 : index
    %c0_2 = arith.constant 0 : index
    %1 = vector.load %arg2[%c0_1, %c0_2] : memref<784x128xf32, #tpu.memory_space<vmem>>, vector<784x128xf32>
    %cst = arith.constant dense<0.000000e+00> : vector<8x128xf32>
    %2 = tpu.matmul %0, %1, %cst {dimension_numbers = #tpu.dot_dimension_numbers<[1], [0], [0], [1], [0, 0, 1, 1], [], []>} : vector<8x784xf32>, vector<784x128xf32>, vector<8x128xf32> -> vector<8x128xf32>
    %c0_3 = arith.constant 0 : index
    %c0_4 = arith.constant 0 : index
    %3 = vector.load %arg3[%c0_3, %c0_4] : memref<1x128xf32, #tpu.memory_space<vmem>>, vector<1x128xf32>
    %4 = vector.broadcast %3 : vector<1x128xf32> to vector<8x128xf32>
    %5 = arith.addf %2, %4 : vector<8x128xf32>
    %cst_5 = arith.constant 0.000000e+00 : f32
    %6 = vector.broadcast %cst_5 : f32 to vector<8x128xf32>
    %7 = arith.maximumf %5, %6 : vector<8x128xf32>
    %c0_6 = arith.constant 0 : index
    %c0_7 = arith.constant 0 : index
    %8 = vector.load %arg4[%c0_6, %c0_7] : memref<128x128xf32, #tpu.memory_space<vmem>>, vector<128x128xf32>
    %cst_8 = arith.constant dense<0.000000e+00> : vector<8x128xf32>
    %9 = tpu.matmul %7, %8, %cst_8 {dimension_numbers = #tpu.dot_dimension_numbers<[1], [0], [0], [1], [0, 0, 1, 1], [], []>} : vector<8x128xf32>, vector<128x128xf32>, vector<8x128xf32> -> vector<8x128xf32>
    %c0_9 = arith.constant 0 : index
    %c0_10 = arith.constant 0 : index
    %10 = vector.load %arg5[%c0_9, %c0_10] : memref<1x128xf32, #tpu.memory_space<vmem>>, vector<1x128xf32>
    %11 = vector.broadcast %10 : vector<1x128xf32> to vector<8x128xf32>
    %12 = arith.addf %9, %11 : vector<8x128xf32>
    %cst_11 = arith.constant 0.000000e+00 : f32
    %13 = vector.broadcast %cst_11 : f32 to vector<8x128xf32>
    %14 = arith.maximumf %12, %13 : vector<8x128xf32>
    %c0_12 = arith.constant 0 : index
    %c0_13 = arith.constant 0 : index
    %15 = vector.load %arg6[%c0_12, %c0_13] : memref<128x128xf32, #tpu.memory_space<vmem>>, vector<128x128xf32>
    %cst_14 = arith.constant dense<0.000000e+00> : vector<8x128xf32>
    %16 = tpu.matmul %14, %15, %cst_14 {dimension_numbers = #tpu.dot_dimension_numbers<[1], [0], [0], [1], [0, 0, 1, 1], [], []>} : vector<8x128xf32>, vector<128x128xf32>, vector<8x128xf32> -> vector<8x128xf32>
    %c0_15 = arith.constant 0 : index
    %c0_16 = arith.constant 0 : index
    %17 = vector.load %arg7[%c0_15, %c0_16] : memref<1x128xf32, #tpu.memory_space<vmem>>, vector<1x128xf32>
    %18 = vector.broadcast %17 : vector<1x128xf32> to vector<8x128xf32>
    %19 = arith.addf %16, %18 : vector<8x128xf32>
    %cst_17 = arith.constant 0.000000e+00 : f32
    %20 = vector.broadcast %cst_17 : f32 to vector<8x128xf32>
    %21 = arith.maximumf %19, %20 : vector<8x128xf32>
    %c0_18 = arith.constant 0 : index
    %c0_19 = arith.constant 0 : index
    %22 = vector.load %arg8[%c0_18, %c0_19] : memref<128x128xf32, #tpu.memory_space<vmem>>, vector<128x128xf32>
    %cst_20 = arith.constant dense<0.000000e+00> : vector<8x128xf32>
    %23 = tpu.matmul %21, %22, %cst_20 {dimension_numbers = #tpu.dot_dimension_numbers<[1], [0], [0], [1], [0, 0, 1, 1], [], []>} : vector<8x128xf32>, vector<128x128xf32>, vector<8x128xf32> -> vector<8x128xf32>
    %c0_21 = arith.constant 0 : index
    %c0_22 = arith.constant 0 : index
    %24 = vector.load %arg9[%c0_21, %c0_22] : memref<1x128xf32, #tpu.memory_space<vmem>>, vector<1x128xf32>
    %25 = vector.broadcast %24 : vector<1x128xf32> to vector<8x128xf32>
    %26 = arith.addf %23, %25 : vector<8x128xf32>
    %cst_23 = arith.constant dense<0xFF800000> : vector<8xf32>
    %27 = vector.multi_reduction <maximumf>, %26, %cst_23 [1] : vector<8x128xf32> to vector<8xf32>
    %28 = vector.shape_cast %27 : vector<8xf32> to vector<8x1xf32>
    %29 = vector.broadcast %28 : vector<8x1xf32> to vector<8x128xf32>
    %30 = arith.subf %26, %29 : vector<8x128xf32>
    %31 = math.exp %30 : vector<8x128xf32>
    %cst_24 = arith.constant dense<0.000000e+00> : vector<8xf32>
    %32 = vector.multi_reduction <add>, %31, %cst_24 [1] : vector<8x128xf32> to vector<8xf32>
    %33 = vector.shape_cast %32 : vector<8xf32> to vector<8x1xf32>
    %34 = math.log %33 : vector<8x1xf32>
    %35 = vector.broadcast %34 : vector<8x1xf32> to vector<8x128xf32>
    %36 = arith.subf %30, %35 : vector<8x128xf32>
    %c0_25 = arith.constant 0 : index
    %c0_26 = arith.constant 0 : index
    %37 = vector.load %arg10[%c0_25, %c0_26] : memref<8x128xf32, #tpu.memory_space<vmem>>, vector<8x128xf32>
    tpu.vector_store %arg10[%c0_25, %c0_26], %36 {strides = array<i32>} : memref<8x128xf32, #tpu.memory_space<vmem>>, vector<8x128xf32>,
    return
  }
  func.func @transform_0(%arg0: i32) -> (i32, i32) {
    %c0_i32 = arith.constant 0 : i32
    %c0_i32_0 = arith.constant 0 : i32
    return %arg0, %c0_i32 : i32, i32
  }
  func.func @transform_1(%arg0: i32) -> (i32, i32) {
    %c0_i32 = arith.constant 0 : i32
    %c0_i32_0 = arith.constant 0 : i32
    %c0_i32_1 = arith.constant 0 : i32
    return %c0_i32, %c0_i32_0 : i32, i32
  }
  func.func @transform_2(%arg0: i32) -> (i32, i32) {
    %c0_i32 = arith.constant 0 : i32
    %c0_i32_0 = arith.constant 0 : i32
    %c0_i32_1 = arith.constant 0 : i32
    return %c0_i32, %c0_i32_0 : i32, i32
  }
  func.func @transform_3(%arg0: i32) -> (i32, i32) {
    %c0_i32 = arith.constant 0 : i32
    %c0_i32_0 = arith.constant 0 : i32
    %c0_i32_1 = arith.constant 0 : i32
    return %c0_i32, %c0_i32_0 : i32, i32
  }
  func.func @transform_4(%arg0: i32) -> (i32, i32) {
    %c0_i32 = arith.constant 0 : i32
    %c0_i32_0 = arith.constant 0 : i32
    %c0_i32_1 = arith.constant 0 : i32
    return %c0_i32, %c0_i32_0 : i32, i32
  }
  func.func @transform_5(%arg0: i32) -> (i32, i32) {
    %c0_i32 = arith.constant 0 : i32
    %c0_i32_0 = arith.constant 0 : i32
    %c0_i32_1 = arith.constant 0 : i32
    return %c0_i32, %c0_i32_0 : i32, i32
  }
  func.func @transform_6(%arg0: i32) -> (i32, i32) {
    %c0_i32 = arith.constant 0 : i32
    %c0_i32_0 = arith.constant 0 : i32
    %c0_i32_1 = arith.constant 0 : i32
    return %c0_i32, %c0_i32_0 : i32, i32
  }
  func.func @transform_7(%arg0: i32) -> (i32, i32) {
    %c0_i32 = arith.constant 0 : i32
    %c0_i32_0 = arith.constant 0 : i32
    %c0_i32_1 = arith.constant 0 : i32
    return %c0_i32, %c0_i32_0 : i32, i32
  }
  func.func @transform_8(%arg0: i32) -> (i32, i32) {
    %c0_i32 = arith.constant 0 : i32
    %c0_i32_0 = arith.constant 0 : i32
    %c0_i32_1 = arith.constant 0 : i32
    return %c0_i32, %c0_i32_0 : i32, i32
  }
  func.func @transform_9(%arg0: i32) -> (i32, i32) {
    %c0_i32 = arith.constant 0 : i32
    %c0_i32_0 = arith.constant 0 : i32
    return %arg0, %c0_i32 : i32, i32
  }
}

</mosaic_0001>

<llo_original>
// kernel: net_forward.1
$region0: #{net_forward.1}
  #allocation0 [shape = 'u32[]', space=smem, size = 0x4, offset = 0x4, fixed_abs, tag = 'smem constant byte address 0x4 - core index']
  #allocation1 [shape = 'u32[144,128]{1,0:T(1,128)}', space=vmem, size = 0x12000, scoped, tag = 'internal scratch']
  %s0 = inlined_call_operand.hbm [shape: f32[8,784], index: 0, kind: input, shape index: {}]
  %s1 = inlined_call_operand.hbm [shape: f32[784,128], index: 1, kind: input, shape index: {}]
  %s2 = inlined_call_operand.vmem [shape: f32[1,128], index: 2, kind: input, shape index: {}]
  %s3 = inlined_call_operand.hbm [shape: f32[128,128], index: 3, kind: input, shape index: {}]
  %s4 = inlined_call_operand.vmem [shape: f32[1,128], index: 4, kind: input, shape index: {}]
  %s5 = inlined_call_operand.hbm [shape: f32[128,128], index: 5, kind: input, shape index: {}]
  %s6 = inlined_call_operand.vmem [shape: f32[1,128], index: 6, kind: input, shape index: {}]
  %s7 = inlined_call_operand.hbm [shape: f32[128,128], index: 7, kind: input, shape index: {}]
  %s8 = inlined_call_operand.vmem [shape: f32[1,128], index: 8, kind: input, shape index: {}]
  %s9 = inlined_call_operand.hbm [shape: f32[8,128], index: 9, kind: output, shape index: {}]
  %s10 = sld [smem:[#allocation0]]
  $region66: #{net_forward.1} parent=0
    _
  %s12 = ssub.s32 1, %s10
  %s13 = scalar_select 0, %s12, %s10
  $region1: #{net_forward.1} parent=0
    #allocation2 [shape = 'u8[28672]{0}', space=vmem, size = 0x7000, scoped, tag = 'input window, operand 0, single buffered']
    #allocation3 [shape = 's32[1]{0}', space=sflag, size = 0x4, scoped, tag = 'scoped memory for net_forward.1']
    #allocation4 [shape = 's32[1]{0}', space=sflag, size = 0x4, scoped, tag = 'scoped memory for net_forward.1']
    #allocation5 [shape = 'u8[401408]{0}', space=vmem, size = 0x62000, scoped, tag = 'input window, operand 1, single buffered']
    #allocation6 [shape = 's32[1]{0}', space=sflag, size = 0x4, scoped, tag = 'scoped memory for net_forward.1']
    #allocation7 [shape = 'u8[65536]{0}', space=vmem, size = 0x10000, scoped, tag = 'input window, operand 3, single buffered']
    #allocation8 [shape = 'u8[65536]{0}', space=vmem, size = 0x10000, scoped, tag = 'input window, operand 5, single buffered']
    #allocation9 [shape = 's32[1]{0}', space=sflag, size = 0x4, scoped, tag = 'scoped memory for net_forward.1']
    #allocation10 [shape = 'u8[65536]{0}', space=vmem, size = 0x10000, scoped, tag = 'input window, operand 7, single buffered']
    #allocation11 [shape = 'u8[4096]{0}', space=vmem, size = 0x1000, scoped, tag = 'output window, operand 0, single buffered']
    %14 = vsyncpa [#allocation3], 0
    %15 = vsyncpa [#allocation6], 0
    %16 = vsyncpa [#allocation9], 0
    %17 = vsyncpa [#allocation4], 0
    // Predicated region
    $region2: #{net_forward.1} parent=1 // pred_check
      _
    $region3: #{net_forward.1} parent=1 // pred_check_branch
      %19 = sbr.rel (0) target = $region5
    $region4: #{net_forward.1} parent=1 // pred_region
      %s21 = ssub.s32 896, 896
      %22 = vsyncadd [#allocation3], %s21
      %s24 = sshll.u32 [#allocation2], 4
      %s25 = int_to_ptr.vmem [resolvable:$true] %s24
      %27 = dma.hbm_to_vmem [thread:$0]  %s0, 896, %s25, [#allocation3]
    $region5: #{net_forward.1} parent=1 // pred_fallthru
      _
    // Predicated region
    $region6: #{net_forward.1} parent=1 // pred_check
      _
    $region7: #{net_forward.1} parent=1 // pred_check_branch
      %29 = sbr.rel (0) target = $region9
    $region8: #{net_forward.1} parent=1 // pred_region
      %s31 = ssub.s32 12544, 12544
      %32 = vsyncadd [#allocation6], %s31
      %s33 = sshll.u32 [#allocation5], 4
      %s34 = int_to_ptr.vmem [resolvable:$true] %s33
      %39 = dma.hbm_to_vmem [thread:$0]  %s1, 12544, %s34, [#allocation6], 128, 128, 8
    $region9: #{net_forward.1} parent=1 // pred_fallthru
      _
    // Predicated region
    $region10: #{net_forward.1} parent=1 // pred_check
      _
    $region11: #{net_forward.1} parent=1 // pred_check_branch
      %41 = sbr.rel (0) target = $region13
    $region12: #{net_forward.1} parent=1 // pred_region
      _
    $region13: #{net_forward.1} parent=1 // pred_fallthru
      _
    // Predicated region
    $region14: #{net_forward.1} parent=1 // pred_check
      _
    $region15: #{net_forward.1} parent=1 // pred_check_branch
      %43 = sbr.rel (0) target = $region17
    $region16: #{net_forward.1} parent=1 // pred_region
      %s45 = ssub.s32 2048, 2048
      %46 = vsyncadd [#allocation6], %s45
      %s47 = sshll.u32 [#allocation7], 4
      %s48 = int_to_ptr.vmem [resolvable:$true] %s47
      %53 = dma.hbm_to_vmem [thread:$0]  %s3, 2048, %s48, [#allocation6], 128, 128, 8
    $region17: #{net_forward.1} parent=1 // pred_fallthru
      _
    // Predicated region
    $region18: #{net_forward.1} parent=1 // pred_check
      _
    $region19: #{net_forward.1} parent=1 // pred_check_branch
      %55 = sbr.rel (0) target = $region21
    $region20: #{net_forward.1} parent=1 // pred_region
      _
    $region21: #{net_forward.1} parent=1 // pred_fallthru
      _
    // Predicated region
    $region22: #{net_forward.1} parent=1 // pred_check
      _
    $region23: #{net_forward.1} parent=1 // pred_check_branch
      %57 = sbr.rel (0) target = $region25
    $region24: #{net_forward.1} parent=1 // pred_region
      %s59 = ssub.s32 2048, 2048
      %60 = vsyncadd [#allocation9], %s59
      %s61 = sshll.u32 [#allocation8], 4
      %s62 = int_to_ptr.vmem [resolvable:$true] %s61
      %67 = dma.hbm_to_vmem [thread:$0]  %s5, 2048, %s62, [#allocation9], 128, 128, 8
    $region25: #{net_forward.1} parent=1 // pred_fallthru
      _
    // Predicated region
    $region26: #{net_forward.1} parent=1 // pred_check
      _
    $region27: #{net_forward.1} parent=1 // pred_check_branch
      %69 = sbr.rel (0) target = $region29
    $region28: #{net_forward.1} parent=1 // pred_region
      _
    $region29: #{net_forward.1} parent=1 // pred_fallthru
      _
    // Predicated region
    $region30: #{net_forward.1} parent=1 // pred_check
      _
    $region31: #{net_forward.1} parent=1 // pred_check_branch
      %71 = sbr.rel (0) target = $region33
    $region32: #{net_forward.1} parent=1 // pred_region
      %s73 = ssub.s32 2048, 2048
      %74 = vsyncadd [#allocation9], %s73
      %s75 = sshll.u32 [#allocation10], 4
      %s76 = int_to_ptr.vmem [resolvable:$true] %s75
      %81 = dma.hbm_to_vmem [thread:$0]  %s7, 2048, %s76, [#allocation9], 128, 128, 8
    $region33: #{net_forward.1} parent=1 // pred_fallthru
      _
    // Predicated region
    $region34: #{net_forward.1} parent=1 // pred_check
      _
    $region35: #{net_forward.1} parent=1 // pred_check_branch
      %83 = sbr.rel (0) target = $region37
    $region36: #{net_forward.1} parent=1 // pred_region
      _
    $region37: #{net_forward.1} parent=1 // pred_fallthru
      _
    // Predicated region
    $region38: #{net_forward.1} parent=1 // pred_check
      _
    $region39: #{net_forward.1} parent=1 // pred_check_branch
      %85 = sbr.rel (0) target = $region41
    $region40: #{net_forward.1} parent=1 // pred_region
      %86 = dma.done [#allocation3], 896
    $region41: #{net_forward.1} parent=1 // pred_fallthru
      _
    // Predicated region
    $region42: #{net_forward.1} parent=1 // pred_check
      _
    $region43: #{net_forward.1} parent=1 // pred_check_branch
      %88 = sbr.rel (0) target = $region45
    $region44: #{net_forward.1} parent=1 // pred_region
      %89 = dma.done [#allocation6], 12544
    $region45: #{net_forward.1} parent=1 // pred_fallthru
      _
    // Predicated region
    $region46: #{net_forward.1} parent=1 // pred_check
      _
    $region47: #{net_forward.1} parent=1 // pred_check_branch
      %91 = sbr.rel (0) target = $region49
    $region48: #{net_forward.1} parent=1 // pred_region
      %92 = dma.done [#allocation6], 2048
    $region49: #{net_forward.1} parent=1 // pred_fallthru
      _
    // Predicated region
    $region50: #{net_forward.1} parent=1 // pred_check
      _
    $region51: #{net_forward.1} parent=1 // pred_check_branch
      %94 = sbr.rel (0) target = $region53
    $region52: #{net_forward.1} parent=1 // pred_region
      %95 = dma.done [#allocation9], 2048
    $region53: #{net_forward.1} parent=1 // pred_fallthru
      _
    // Predicated region
    $region54: #{net_forward.1} parent=1 // pred_check
      _
    $region55: #{net_forward.1} parent=1 // pred_check_branch
      %97 = sbr.rel (0) target = $region57
    $region56: #{net_forward.1} parent=1 // pred_region
      %98 = dma.done [#allocation9], 2048
    $region57: #{net_forward.1} parent=1 // pred_fallthru
      _
    %v99 = vld [vmem:[#allocation2] sm:$0xff]
    %v100 = vld [vmem:[#allocation2 + $0x8] sm:$0xff]
    %v101 = vld [vmem:[#allocation2 + $0x10] sm:$0xff]
    %v102 = vld [vmem:[#allocation2 + $0x18] sm:$0xff]
    %v103 = vld [vmem:[#allocation2 + $0x20] sm:$0xff]
    %v104 = vld [vmem:[#allocation2 + $0x28] sm:$0xff]
    %v105 = vld [vmem:[#allocation2 + $0x30] sm:$0xff]
    %v106 = vld [vmem:[#allocation5] sm:$0xff]
    %v107 = vld [vmem:[#allocation5 + $0x8] sm:$0xff]
    %v108 = vld [vmem:[#allocation5 + $0x10] sm:$0xff]
    %v109 = vld [vmem:[#allocation5 + $0x18] sm:$0xff]
    %v110 = vld [vmem:[#allocation5 + $0x20] sm:$0xff]
    %v111 = vld [vmem:[#allocation5 + $0x28] sm:$0xff]
    %v112 = vld [vmem:[#allocation5 + $0x30] sm:$0xff]
    %v113 = vld [vmem:[#allocation5 + $0x38] sm:$0xff]
    %v114 = vld [vmem:[#allocation5 + $0x40] sm:$0xff]
    %v115 = vld [vmem:[#allocation5 + $0x48] sm:$0xff]
    %v116 = vld [vmem:[#allocation5 + $0x50] sm:$0xff]
    %v117 = vld [vmem:[#allocation5 + $0x58] sm:$0xff]
    %v118 = vld [vmem:[#allocation5 + $0x60] sm:$0xff]
    %v119 = vld [vmem:[#allocation5 + $0x68] sm:$0xff]
    %v120 = vld [vmem:[#allocation5 + $0x70] sm:$0xff]
    %v121 = vld [vmem:[#allocation5 + $0x78] sm:$0xff]
    %v122 = vld [vmem:[#allocation5 + $0x80] sm:$0xff]
    %v123 = vld [vmem:[#allocation5 + $0x88] sm:$0xff]
    %v124 = vld [vmem:[#allocation5 + $0x90] sm:$0xff]
    %v125 = vld [vmem:[#allocation5 + $0x98] sm:$0xff]
    %v126 = vld [vmem:[#allocation5 + $0xa0] sm:$0xff]
    %v127 = vld [vmem:[#allocation5 + $0xa8] sm:$0xff]
    %v128 = vld [vmem:[#allocation5 + $0xb0] sm:$0xff]
    %v129 = vld [vmem:[#allocation5 + $0xb8] sm:$0xff]
    %v130 = vld [vmem:[#allocation5 + $0xc0] sm:$0xff]
    %v131 = vld [vmem:[#allocation5 + $0xc8] sm:$0xff]
    %v132 = vld [vmem:[#allocation5 + $0xd0] sm:$0xff]
    %v133 = vld [vmem:[#allocation5 + $0xd8] sm:$0xff]
    %v134 = vld [vmem:[#allocation5 + $0xe0] sm:$0xff]
    %v135 = vld [vmem:[#allocation5 + $0xe8] sm:$0xff]
    %v136 = vld [vmem:[#allocation5 + $0xf0] sm:$0xff]
    %v137 = vld [vmem:[#allocation5 + $0xf8] sm:$0xff]
    %v138 = vld [vmem:[#allocation5 + $0x100] sm:$0xff]
    %v139 = vld [vmem:[#allocation5 + $0x108] sm:$0xff]
    %v140 = vld [vmem:[#allocation5 + $0x110] sm:$0xff]
    %v141 = vld [vmem:[#allocation5 + $0x118] sm:$0xff]
    %v142 = vld [vmem:[#allocation5 + $0x120] sm:$0xff]
    %v143 = vld [vmem:[#allocation5 + $0x128] sm:$0xff]
    %v144 = vld [vmem:[#allocation5 + $0x130] sm:$0xff]
    %v145 = vld [vmem:[#allocation5 + $0x138] sm:$0xff]
    %v146 = vld [vmem:[#allocation5 + $0x140] sm:$0xff]
    %v147 = vld [vmem:[#allocation5 + $0x148] sm:$0xff]
    %v148 = vld [vmem:[#allocation5 + $0x150] sm:$0xff]
    %v149 = vld [vmem:[#allocation5 + $0x158] sm:$0xff]
    %v150 = vld [vmem:[#allocation5 + $0x160] sm:$0xff]
    %v151 = vld [vmem:[#allocation5 + $0x168] sm:$0xff]
    %v152 = vld [vmem:[#allocation5 + $0x170] sm:$0xff]
    %v153 = vld [vmem:[#allocation5 + $0x178] sm:$0xff]
    %v154 = vld [vmem:[#allocation5 + $0x180] sm:$0xff]
    %v155 = vld [vmem:[#allocation5 + $0x188] sm:$0xff]
    %v156 = vld [vmem:[#allocation5 + $0x190] sm:$0xff]
    %v157 = vld [vmem:[#allocation5 + $0x198] sm:$0xff]
    %v158 = vld [vmem:[#allocation5 + $0x1a0] sm:$0xff]
    %v159 = vld [vmem:[#allocation5 + $0x1a8] sm:$0xff]
    %v160 = vld [vmem:[#allocation5 + $0x1b0] sm:$0xff]
    %v161 = vld [vmem:[#allocation5 + $0x1b8] sm:$0xff]
    %v162 = vld [vmem:[#allocation5 + $0x1c0] sm:$0xff]
    %v163 = vld [vmem:[#allocation5 + $0x1c8] sm:$0xff]
    %v164 = vld [vmem:[#allocation5 + $0x1d0] sm:$0xff]
    %v165 = vld [vmem:[#allocation5 + $0x1d8] sm:$0xff]
    %v166 = vld [vmem:[#allocation5 + $0x1e0] sm:$0xff]
    %v167 = vld [vmem:[#allocation5 + $0x1e8] sm:$0xff]
    %v168 = vld [vmem:[#allocation5 + $0x1f0] sm:$0xff]
    %v169 = vld [vmem:[#allocation5 + $0x1f8] sm:$0xff]
    %v170 = vld [vmem:[#allocation5 + $0x200] sm:$0xff]
    %v171 = vld [vmem:[#allocation5 + $0x208] sm:$0xff]
    %v172 = vld [vmem:[#allocation5 + $0x210] sm:$0xff]
    %v173 = vld [vmem:[#allocation5 + $0x218] sm:$0xff]
    %v174 = vld [vmem:[#allocation5 + $0x220] sm:$0xff]
    %v175 = vld [vmem:[#allocation5 + $0x228] sm:$0xff]
    %v176 = vld [vmem:[#allocation5 + $0x230] sm:$0xff]
    %v177 = vld [vmem:[#allocation5 + $0x238] sm:$0xff]
    %v178 = vld [vmem:[#allocation5 + $0x240] sm:$0xff]
    %v179 = vld [vmem:[#allocation5 + $0x248] sm:$0xff]
    %v180 = vld [vmem:[#allocation5 + $0x250] sm:$0xff]
    %v181 = vld [vmem:[#allocation5 + $0x258] sm:$0xff]
    %v182 = vld [vmem:[#allocation5 + $0x260] sm:$0xff]
    %v183 = vld [vmem:[#allocation5 + $0x268] sm:$0xff]
    %v184 = vld [vmem:[#allocation5 + $0x270] sm:$0xff]
    %v185 = vld [vmem:[#allocation5 + $0x278] sm:$0xff]
    %v186 = vld [vmem:[#allocation5 + $0x280] sm:$0xff]
    %v187 = vld [vmem:[#allocation5 + $0x288] sm:$0xff]
    %v188 = vld [vmem:[#allocation5 + $0x290] sm:$0xff]
    %v189 = vld [vmem:[#allocation5 + $0x298] sm:$0xff]
    %v190 = vld [vmem:[#allocation5 + $0x2a0] sm:$0xff]
    %v191 = vld [vmem:[#allocation5 + $0x2a8] sm:$0xff]
    %v192 = vld [vmem:[#allocation5 + $0x2b0] sm:$0xff]
    %v193 = vld [vmem:[#allocation5 + $0x2b8] sm:$0xff]
    %v194 = vld [vmem:[#allocation5 + $0x2c0] sm:$0xff]
    %v195 = vld [vmem:[#allocation5 + $0x2c8] sm:$0xff]
    %v196 = vld [vmem:[#allocation5 + $0x2d0] sm:$0xff]
    %v197 = vld [vmem:[#allocation5 + $0x2d8] sm:$0xff]
    %v198 = vld [vmem:[#allocation5 + $0x2e0] sm:$0xff]
    %v199 = vld [vmem:[#allocation5 + $0x2e8] sm:$0xff]
    %v200 = vld [vmem:[#allocation5 + $0x2f0] sm:$0xff]
    %v201 = vld [vmem:[#allocation5 + $0x2f8] sm:$0xff]
    %v202 = vld [vmem:[#allocation5 + $0x300] sm:$0xff]
    %v203 = vld [vmem:[#allocation5 + $0x308] sm:$0xff]
    %v204 = vld [vmem:[%s2] sm:$0x1]
    %v206 = vlaneseq
    %v207 = vshrl.u32 %v206, 7
    %v208 = vsub.s32 0, %v207
    %v209 = vrot.slane %v204, %v208
    %vm211 = vcmask 130048
    %v213 = vsel %vm211, %v105, 0
    %215 = vmatprep.subr.mxu0 0.0
    %216 = vmatpush1.msra.mxu0 %v106
    %217 = vmatprep.subr.mxu0 0.0
    %218 = vmatpush1.msra.mxu0 %v107
    %219 = vmatprep.subr.mxu0 0.0
    %220 = vmatpush1.msra.mxu0 %v108
    %221 = vmatprep.subr.mxu0 0.0
    %222 = vmatpush1.msra.mxu0 %v109
    %223 = vmatprep.subr.mxu0 0.0
    %224 = vmatpush1.msra.mxu0 %v110
    %225 = vmatprep.subr.mxu0 0.0
    %226 = vmatpush1.msra.mxu0 %v111
    %227 = vmatprep.subr.mxu0 0.0
    %228 = vmatpush1.msra.mxu0 %v112
    %229 = vmatprep.subr.mxu0 0.0
    %230 = vmatpush1.msra.mxu0 %v113
    %231 = vmatprep.subr.mxu0 0.0
    %232 = vmatpush1.msra.mxu0 %v114
    %233 = vmatprep.subr.mxu0 0.0
    %234 = vmatpush1.msra.mxu0 %v115
    %235 = vmatprep.subr.mxu0 0.0
    %236 = vmatpush1.msra.mxu0 %v116
    %237 = vmatprep.subr.mxu0 0.0
    %238 = vmatpush1.msra.mxu0 %v117
    %239 = vmatprep.subr.mxu0 0.0
    %240 = vmatpush1.msra.mxu0 %v118
    %241 = vmatprep.subr.mxu0 0.0
    %242 = vmatpush1.msra.mxu0 %v119
    %243 = vmatprep.subr.mxu0 0.0
    %244 = vmatpush1.msra.mxu0 %v120
    %245 = vmatprep.subr.mxu0 0.0
    %246 = vmatpush1.msra.mxu0 %v121
    %247 = vmatprep.subr.mxu0 0.0
    %248 = vmatpush1.msra.mxu0 %v122
    %249 = vmatprep.subr.mxu0 0.0
    %250 = vmatpush1.msra.mxu0 %v123
    %251 = vmatprep.subr.mxu0 0.0
    %252 = vmatpush1.msra.mxu0 %v124
    %253 = vmatprep.subr.mxu0 0.0
    %254 = vmatpush1.msra.mxu0 %v125
    %255 = vmatprep.subr.mxu0 0.0
    %256 = vmatpush1.msra.mxu0 %v126
    %257 = vmatprep.subr.mxu0 0.0
    %258 = vmatpush1.msra.mxu0 %v127
    %259 = vmatprep.subr.mxu0 0.0
    %260 = vmatpush1.msra.mxu0 %v128
    %261 = vmatprep.subr.mxu0 0.0
    %262 = vmatpush1.msra.mxu0 %v129
    %263 = vmatprep.subr.mxu0 0.0
    %264 = vmatpush1.msra.mxu0 %v130
    %265 = vmatprep.subr.mxu0 0.0
    %266 = vmatpush1.msra.mxu0 %v131
    %267 = vmatprep.subr.mxu0 0.0
    %268 = vmatpush1.msra.mxu0 %v132
    %269 = vmatprep.subr.mxu0 0.0
    %270 = vmatpush1.msra.mxu0 %v133
    %271 = vmatprep.subr.mxu0 0.0
    %272 = vmatpush1.msra.mxu0 %v134
    %273 = vmatprep.subr.mxu0 0.0
    %274 = vmatpush1.msra.mxu0 %v135
    %275 = vmatprep.subr.mxu0 0.0
    %276 = vmatpush1.msra.mxu0 %v136
    %277 = vmatprep.subr.mxu0 0.0
    %278 = vmatpush1.msra.mxu0 %v137
    %279 = vmatprep.mubr.f32.mxu0 %v100
    %280 = vmatmul.mubr.f32.gmra.mrb[0].mxu0 %v99
    %v281 = vpop.f32.mrb[0].mxu0
    %v282 = vadd.f32 %v209, %v281
    %v283 = vpop.f32.mrb[0].mxu0
    %284 = vdwg.mxu0
    %285 = vmatprep.subr.mxu0 0.0
    %286 = vmatpush1.msra.mxu0 %v138
    %287 = vmatprep.subr.mxu0 0.0
    %288 = vmatpush1.msra.mxu0 %v139
    %289 = vmatprep.subr.mxu0 0.0
    %290 = vmatpush1.msra.mxu0 %v140
    %291 = vmatprep.subr.mxu0 0.0
    %292 = vmatpush1.msra.mxu0 %v141
    %293 = vmatprep.subr.mxu0 0.0
    %294 = vmatpush1.msra.mxu0 %v142
    %295 = vmatprep.subr.mxu0 0.0
    %296 = vmatpush1.msra.mxu0 %v143
    %297 = vmatprep.subr.mxu0 0.0
    %298 = vmatpush1.msra.mxu0 %v144
    %299 = vmatprep.subr.mxu0 0.0
    %300 = vmatpush1.msra.mxu0 %v145
    %301 = vmatprep.subr.mxu0 0.0
    %302 = vmatpush1.msra.mxu0 %v146
    %303 = vmatprep.subr.mxu0 0.0
    %304 = vmatpush1.msra.mxu0 %v147
    %305 = vmatprep.subr.mxu0 0.0
    %306 = vmatpush1.msra.mxu0 %v148
    %307 = vmatprep.subr.mxu0 0.0
    %308 = vmatpush1.msra.mxu0 %v149
    %309 = vmatprep.subr.mxu0 0.0
    %310 = vmatpush1.msra.mxu0 %v150
    %311 = vmatprep.subr.mxu0 0.0
    %312 = vmatpush1.msra.mxu0 %v151
    %313 = vmatprep.subr.mxu0 0.0
    %314 = vmatpush1.msra.mxu0 %v152
    %315 = vmatprep.subr.mxu0 0.0
    %316 = vmatpush1.msra.mxu0 %v153
    %317 = vmatprep.subr.mxu0 0.0
    %318 = vmatpush1.msra.mxu0 %v154
    %319 = vmatprep.subr.mxu0 0.0
    %320 = vmatpush1.msra.mxu0 %v155
    %321 = vmatprep.subr.mxu0 0.0
    %322 = vmatpush1.msra.mxu0 %v156
    %323 = vmatprep.subr.mxu0 0.0
    %324 = vmatpush1.msra.mxu0 %v157
    %325 = vmatprep.subr.mxu0 0.0
    %326 = vmatpush1.msra.mxu0 %v158
    %327 = vmatprep.subr.mxu0 0.0
    %328 = vmatpush1.msra.mxu0 %v159
    %329 = vmatprep.subr.mxu0 0.0
    %330 = vmatpush1.msra.mxu0 %v160
    %331 = vmatprep.subr.mxu0 0.0
    %332 = vmatpush1.msra.mxu0 %v161
    %333 = vmatprep.subr.mxu0 0.0
    %334 = vmatpush1.msra.mxu0 %v162
    %335 = vmatprep.subr.mxu0 0.0
    %336 = vmatpush1.msra.mxu0 %v163
    %337 = vmatprep.subr.mxu0 0.0
    %338 = vmatpush1.msra.mxu0 %v164
    %339 = vmatprep.subr.mxu0 0.0
    %340 = vmatpush1.msra.mxu0 %v165
    %341 = vmatprep.subr.mxu0 0.0
    %342 = vmatpush1.msra.mxu0 %v166
    %343 = vmatprep.subr.mxu0 0.0
    %344 = vmatpush1.msra.mxu0 %v167
    %345 = vmatprep.subr.mxu0 0.0
    %346 = vmatpush1.msra.mxu0 %v168
    %347 = vmatprep.subr.mxu0 0.0
    %348 = vmatpush1.msra.mxu0 %v169
    %349 = vmatprep.mubr.f32.mxu0 %v102
    %350 = vmatmul.mubr.f32.gmra.mrb[0].mxu0 %v101
    %v351 = vpop.f32.mrb[0].mxu0
    %v352 = vadd.f32 %v282, %v351
    %v353 = vpop.f32.mrb[0].mxu0
    %354 = vdwg.mxu0
    %355 = vmatprep.subr.mxu0 0.0
    %356 = vmatpush1.msra.mxu0 %v170
    %357 = vmatprep.subr.mxu0 0.0
    %358 = vmatpush1.msra.mxu0 %v171
    %359 = vmatprep.subr.mxu0 0.0
    %360 = vmatpush1.msra.mxu0 %v172
    %361 = vmatprep.subr.mxu0 0.0
    %362 = vmatpush1.msra.mxu0 %v173
    %363 = vmatprep.subr.mxu0 0.0
    %364 = vmatpush1.msra.mxu0 %v174
    %365 = vmatprep.subr.mxu0 0.0
    %366 = vmatpush1.msra.mxu0 %v175
    %367 = vmatprep.subr.mxu0 0.0
    %368 = vmatpush1.msra.mxu0 %v176
    %369 = vmatprep.subr.mxu0 0.0
    %370 = vmatpush1.msra.mxu0 %v177
    %371 = vmatprep.subr.mxu0 0.0
    %372 = vmatpush1.msra.mxu0 %v178
    %373 = vmatprep.subr.mxu0 0.0
    %374 = vmatpush1.msra.mxu0 %v179
    %375 = vmatprep.subr.mxu0 0.0
    %376 = vmatpush1.msra.mxu0 %v180
    %377 = vmatprep.subr.mxu0 0.0
    %378 = vmatpush1.msra.mxu0 %v181
    %379 = vmatprep.subr.mxu0 0.0
    %380 = vmatpush1.msra.mxu0 %v182
    %381 = vmatprep.subr.mxu0 0.0
    %382 = vmatpush1.msra.mxu0 %v183
    %383 = vmatprep.subr.mxu0 0.0
    %384 = vmatpush1.msra.mxu0 %v184
    %385 = vmatprep.subr.mxu0 0.0
    %386 = vmatpush1.msra.mxu0 %v185
    %387 = vmatprep.subr.mxu0 0.0
    %388 = vmatpush1.msra.mxu0 %v186
    %389 = vmatprep.subr.mxu0 0.0
    %390 = vmatpush1.msra.mxu0 %v187
    %391 = vmatprep.subr.mxu0 0.0
    %392 = vmatpush1.msra.mxu0 %v188
    %393 = vmatprep.subr.mxu0 0.0
    %394 = vmatpush1.msra.mxu0 %v189
    %395 = vmatprep.subr.mxu0 0.0
    %396 = vmatpush1.msra.mxu0 %v190
    %397 = vmatprep.subr.mxu0 0.0
    %398 = vmatpush1.msra.mxu0 %v191
    %399 = vmatprep.subr.mxu0 0.0
    %400 = vmatpush1.msra.mxu0 %v192
    %401 = vmatprep.subr.mxu0 0.0
    %402 = vmatpush1.msra.mxu0 %v193
    %403 = vmatprep.subr.mxu0 0.0
    %404 = vmatpush1.msra.mxu0 %v194
    %405 = vmatprep.subr.mxu0 0.0
    %406 = vmatpush1.msra.mxu0 %v195
    %407 = vmatprep.subr.mxu0 0.0
    %408 = vmatpush1.msra.mxu0 %v196
    %409 = vmatprep.subr.mxu0 0.0
    %410 = vmatpush1.msra.mxu0 %v197
    %411 = vmatprep.subr.mxu0 0.0
    %412 = vmatpush1.msra.mxu0 %v198
    %413 = vmatprep.subr.mxu0 0.0
    %414 = vmatpush1.msra.mxu0 %v199
    %415 = vmatprep.subr.mxu0 0.0
    %416 = vmatpush1.msra.mxu0 %v200
    %417 = vmatprep.subr.mxu0 0.0
    %418 = vmatpush1.msra.mxu0 %v201
    %419 = vmatprep.mubr.f32.mxu0 %v104
    %420 = vmatmul.mubr.f32.gmra.mrb[0].mxu0 %v103
    %v421 = vpop.f32.mrb[0].mxu0
    %v422 = vadd.f32 %v352, %v421
    %v423 = vpop.f32.mrb[0].mxu0
    %424 = vdwg.mxu0
    %425 = vmatprep.subr.mxu0 0.0
    %426 = vmatpush1.msra.mxu0 %v202
    %427 = vmatprep.subr.mxu0 0.0
    %428 = vmatpush1.msra.mxu0 %v203
    %429 = vmatprep.subr.mxu0 0.0
    %430 = vmatpush1.msra.mxu0 0.0
    %431 = vmatprep.subr.mxu0 0.0
    %432 = vmatpush1.msra.mxu0 0.0
    %433 = vmatprep.subr.mxu0 0.0
    %434 = vmatpush1.msra.mxu0 0.0
    %435 = vmatprep.subr.mxu0 0.0
    %436 = vmatpush1.msra.mxu0 0.0
    %437 = vmatprep.subr.mxu0 0.0
    %438 = vmatpush1.msra.mxu0 0.0
    %439 = vmatprep.subr.mxu0 0.0
    %440 = vmatpush1.msra.mxu0 0.0
    %441 = vmatprep.subr.mxu0 0.0
    %442 = vmatpush1.msra.mxu0 0.0
    %443 = vmatprep.subr.mxu0 0.0
    %444 = vmatpush1.msra.mxu0 0.0
    %445 = vmatprep.subr.mxu0 0.0
    %446 = vmatpush1.msra.mxu0 0.0
    %447 = vmatprep.subr.mxu0 0.0
    %448 = vmatpush1.msra.mxu0 0.0
    %449 = vmatprep.subr.mxu0 0.0
    %450 = vmatpush1.msra.mxu0 0.0
    %451 = vmatprep.subr.mxu0 0.0
    %452 = vmatpush1.msra.mxu0 0.0
    %453 = vmatprep.subr.mxu0 0.0
    %454 = vmatpush1.msra.mxu0 0.0
    %455 = vmatprep.subr.mxu0 0.0
    %456 = vmatpush1.msra.mxu0 0.0
    %457 = vmatprep.subr.mxu0 0.0
    %458 = vmatpush1.msra.mxu0 0.0
    %459 = vmatprep.subr.mxu0 0.0
    %460 = vmatpush1.msra.mxu0 0.0
    %461 = vmatprep.subr.mxu0 0.0
    %462 = vmatpush1.msra.mxu0 0.0
    %463 = vmatprep.subr.mxu0 0.0
    %464 = vmatpush1.msra.mxu0 0.0
    %465 = vmatprep.subr.mxu0 0.0
    %466 = vmatpush1.msra.mxu0 0.0
    %467 = vmatprep.subr.mxu0 0.0
    %468 = vmatpush1.msra.mxu0 0.0
    %469 = vmatprep.subr.mxu0 0.0
    %470 = vmatpush1.msra.mxu0 0.0
    %471 = vmatprep.subr.mxu0 0.0
    %472 = vmatpush1.msra.mxu0 0.0
    %473 = vmatprep.subr.mxu0 0.0
    %474 = vmatpush1.msra.mxu0 0.0
    %475 = vmatprep.subr.mxu0 0.0
    %476 = vmatpush1.msra.mxu0 0.0
    %477 = vmatprep.subr.mxu0 0.0
    %478 = vmatpush1.msra.mxu0 0.0
    %479 = vmatprep.subr.mxu0 0.0
    %480 = vmatpush1.msra.mxu0 0.0
    %481 = vmatprep.subr.mxu0 0.0
    %482 = vmatpush1.msra.mxu0 0.0
    %483 = vmatprep.subr.mxu0 0.0
    %484 = vmatpush1.msra.mxu0 0.0
    %485 = vmatprep.subr.mxu0 0.0
    %486 = vmatpush1.msra.mxu0 0.0
    %487 = vmatprep.subr.mxu0 0.0
    %488 = vmatpush1.msra.mxu0 0.0
    %489 = vmatprep.mubr.f32.mxu0 0.0
    %490 = vmatmul.mubr.f32.gmra.mrb[0].mxu0 %v213
    %v491 = vpop.f32.mrb[0].mxu0
    %v492 = vadd.f32 %v422, %v491
    %v493 = vpop.f32.mrb[0].mxu0
    %494 = vdwg.mxu0
    %v495 = vmax.f32 %v492, 0.0
    %v496 = vld [vmem:[#allocation7] sm:$0xff]
    %v497 = vld [vmem:[#allocation7 + $0x8] sm:$0xff]
    %v498 = vld [vmem:[#allocation7 + $0x10] sm:$0xff]
    %v499 = vld [vmem:[#allocation7 + $0x18] sm:$0xff]
    %v500 = vld [vmem:[#allocation7 + $0x20] sm:$0xff]
    %v501 = vld [vmem:[#allocation7 + $0x28] sm:$0xff]
    %v502 = vld [vmem:[#allocation7 + $0x30] sm:$0xff]
    %v503 = vld [vmem:[#allocation7 + $0x38] sm:$0xff]
    %v504 = vld [vmem:[#allocation7 + $0x40] sm:$0xff]
    %v505 = vld [vmem:[#allocation7 + $0x48] sm:$0xff]
    %v506 = vld [vmem:[#allocation7 + $0x50] sm:$0xff]
    %v507 = vld [vmem:[#allocation7 + $0x58] sm:$0xff]
    %v508 = vld [vmem:[#allocation7 + $0x60] sm:$0xff]
    %v509 = vld [vmem:[#allocation7 + $0x68] sm:$0xff]
    %v510 = vld [vmem:[#allocation7 + $0x70] sm:$0xff]
    %v511 = vld [vmem:[#allocation7 + $0x78] sm:$0xff]
    %v512 = vld [vmem:[%s4] sm:$0x1]
    %v514 = vlaneseq
    %v515 = vshrl.u32 %v514, 7
    %v516 = vsub.s32 0, %v515
    %v517 = vrot.slane %v512, %v516
    %519 = vmatprep.subr.mxu0 0.0
    %520 = vmatpush1.msra.mxu0 %v496
    %521 = vmatprep.subr.mxu0 0.0
    %522 = vmatpush1.msra.mxu0 %v497
    %523 = vmatprep.subr.mxu0 0.0
    %524 = vmatpush1.msra.mxu0 %v498
    %525 = vmatprep.subr.mxu0 0.0
    %526 = vmatpush1.msra.mxu0 %v499
    %527 = vmatprep.subr.mxu0 0.0
    %528 = vmatpush1.msra.mxu0 %v500
    %529 = vmatprep.subr.mxu0 0.0
    %530 = vmatpush1.msra.mxu0 %v501
    %531 = vmatprep.subr.mxu0 0.0
    %532 = vmatpush1.msra.mxu0 %v502
    %533 = vmatprep.subr.mxu0 0.0
    %534 = vmatpush1.msra.mxu0 %v503
    %535 = vmatprep.subr.mxu0 0.0
    %536 = vmatpush1.msra.mxu0 %v504
    %537 = vmatprep.subr.mxu0 0.0
    %538 = vmatpush1.msra.mxu0 %v505
    %539 = vmatprep.subr.mxu0 0.0
    %540 = vmatpush1.msra.mxu0 %v506
    %541 = vmatprep.subr.mxu0 0.0
    %542 = vmatpush1.msra.mxu0 %v507
    %543 = vmatprep.subr.mxu0 0.0
    %544 = vmatpush1.msra.mxu0 %v508
    %545 = vmatprep.subr.mxu0 0.0
    %546 = vmatpush1.msra.mxu0 %v509
    %547 = vmatprep.subr.mxu0 0.0
    %548 = vmatpush1.msra.mxu0 %v510
    %549 = vmatprep.subr.mxu0 0.0
    %550 = vmatpush1.msra.mxu0 %v511
    %551 = vmatprep.subr.mxu0 0.0
    %552 = vmatpush1.msra.mxu0 0.0
    %553 = vmatprep.subr.mxu0 0.0
    %554 = vmatpush1.msra.mxu0 0.0
    %555 = vmatprep.subr.mxu0 0.0
    %556 = vmatpush1.msra.mxu0 0.0
    %557 = vmatprep.subr.mxu0 0.0
    %558 = vmatpush1.msra.mxu0 0.0
    %559 = vmatprep.subr.mxu0 0.0
    %560 = vmatpush1.msra.mxu0 0.0
    %561 = vmatprep.subr.mxu0 0.0
    %562 = vmatpush1.msra.mxu0 0.0
    %563 = vmatprep.subr.mxu0 0.0
    %564 = vmatpush1.msra.mxu0 0.0
    %565 = vmatprep.subr.mxu0 0.0
    %566 = vmatpush1.msra.mxu0 0.0
    %567 = vmatprep.subr.mxu0 0.0
    %568 = vmatpush1.msra.mxu0 0.0
    %569 = vmatprep.subr.mxu0 0.0
    %570 = vmatpush1.msra.mxu0 0.0
    %571 = vmatprep.subr.mxu0 0.0
    %572 = vmatpush1.msra.mxu0 0.0
    %573 = vmatprep.subr.mxu0 0.0
    %574 = vmatpush1.msra.mxu0 0.0
    %575 = vmatprep.subr.mxu0 0.0
    %576 = vmatpush1.msra.mxu0 0.0
    %577 = vmatprep.subr.mxu0 0.0
    %578 = vmatpush1.msra.mxu0 0.0
    %579 = vmatprep.subr.mxu0 0.0
    %580 = vmatpush1.msra.mxu0 0.0
    %581 = vmatprep.subr.mxu0 0.0
    %582 = vmatpush1.msra.mxu0 0.0
    %583 = vmatprep.mubr.f32.mxu0 0.0
    %584 = vmatmul.mubr.f32.gmra.mrb[0].mxu0 %v495
    %v585 = vpop.f32.mrb[0].mxu0
    %v586 = vadd.f32 %v517, %v585
    %v587 = vpop.f32.mrb[0].mxu0
    %588 = vdwg.mxu0
    %v589 = vmax.f32 %v586, 0.0
    %v590 = vld [vmem:[#allocation8] sm:$0xff]
    %v591 = vld [vmem:[#allocation8 + $0x8] sm:$0xff]
    %v592 = vld [vmem:[#allocation8 + $0x10] sm:$0xff]
    %v593 = vld [vmem:[#allocation8 + $0x18] sm:$0xff]
    %v594 = vld [vmem:[#allocation8 + $0x20] sm:$0xff]
    %v595 = vld [vmem:[#allocation8 + $0x28] sm:$0xff]
    %v596 = vld [vmem:[#allocation8 + $0x30] sm:$0xff]
    %v597 = vld [vmem:[#allocation8 + $0x38] sm:$0xff]
    %v598 = vld [vmem:[#allocation8 + $0x40] sm:$0xff]
    %v599 = vld [vmem:[#allocation8 + $0x48] sm:$0xff]
    %v600 = vld [vmem:[#allocation8 + $0x50] sm:$0xff]
    %v601 = vld [vmem:[#allocation8 + $0x58] sm:$0xff]
    %v602 = vld [vmem:[#allocation8 + $0x60] sm:$0xff]
    %v603 = vld [vmem:[#allocation8 + $0x68] sm:$0xff]
    %v604 = vld [vmem:[#allocation8 + $0x70] sm:$0xff]
    %v605 = vld [vmem:[#allocation8 + $0x78] sm:$0xff]
    %v606 = vld [vmem:[%s6] sm:$0x1]
    %v608 = vlaneseq
    %v609 = vshrl.u32 %v608, 7
    %v610 = vsub.s32 0, %v609
    %v611 = vrot.slane %v606, %v610
    %613 = vmatprep.subr.mxu0 0.0
    %614 = vmatpush1.msra.mxu0 %v590
    %615 = vmatprep.subr.mxu0 0.0
    %616 = vmatpush1.msra.mxu0 %v591
    %617 = vmatprep.subr.mxu0 0.0
    %618 = vmatpush1.msra.mxu0 %v592
    %619 = vmatprep.subr.mxu0 0.0
    %620 = vmatpush1.msra.mxu0 %v593
    %621 = vmatprep.subr.mxu0 0.0
    %622 = vmatpush1.msra.mxu0 %v594
    %623 = vmatprep.subr.mxu0 0.0
    %624 = vmatpush1.msra.mxu0 %v595
    %625 = vmatprep.subr.mxu0 0.0
    %626 = vmatpush1.msra.mxu0 %v596
    %627 = vmatprep.subr.mxu0 0.0
    %628 = vmatpush1.msra.mxu0 %v597
    %629 = vmatprep.subr.mxu0 0.0
    %630 = vmatpush1.msra.mxu0 %v598
    %631 = vmatprep.subr.mxu0 0.0
    %632 = vmatpush1.msra.mxu0 %v599
    %633 = vmatprep.subr.mxu0 0.0
    %634 = vmatpush1.msra.mxu0 %v600
    %635 = vmatprep.subr.mxu0 0.0
    %636 = vmatpush1.msra.mxu0 %v601
    %637 = vmatprep.subr.mxu0 0.0
    %638 = vmatpush1.msra.mxu0 %v602
    %639 = vmatprep.subr.mxu0 0.0
    %640 = vmatpush1.msra.mxu0 %v603
    %641 = vmatprep.subr.mxu0 0.0
    %642 = vmatpush1.msra.mxu0 %v604
    %643 = vmatprep.subr.mxu0 0.0
    %644 = vmatpush1.msra.mxu0 %v605
    %645 = vmatprep.subr.mxu0 0.0
    %646 = vmatpush1.msra.mxu0 0.0
    %647 = vmatprep.subr.mxu0 0.0
    %648 = vmatpush1.msra.mxu0 0.0
    %649 = vmatprep.subr.mxu0 0.0
    %650 = vmatpush1.msra.mxu0 0.0
    %651 = vmatprep.subr.mxu0 0.0
    %652 = vmatpush1.msra.mxu0 0.0
    %653 = vmatprep.subr.mxu0 0.0
    %654 = vmatpush1.msra.mxu0 0.0
    %655 = vmatprep.subr.mxu0 0.0
    %656 = vmatpush1.msra.mxu0 0.0
    %657 = vmatprep.subr.mxu0 0.0
    %658 = vmatpush1.msra.mxu0 0.0
    %659 = vmatprep.subr.mxu0 0.0
    %660 = vmatpush1.msra.mxu0 0.0
    %661 = vmatprep.subr.mxu0 0.0
    %662 = vmatpush1.msra.mxu0 0.0
    %663 = vmatprep.subr.mxu0 0.0
    %664 = vmatpush1.msra.mxu0 0.0
    %665 = vmatprep.subr.mxu0 0.0
    %666 = vmatpush1.msra.mxu0 0.0
    %667 = vmatprep.subr.mxu0 0.0
    %668 = vmatpush1.msra.mxu0 0.0
    %669 = vmatprep.subr.mxu0 0.0
    %670 = vmatpush1.msra.mxu0 0.0
    %671 = vmatprep.subr.mxu0 0.0
    %672 = vmatpush1.msra.mxu0 0.0
    %673 = vmatprep.subr.mxu0 0.0
    %674 = vmatpush1.msra.mxu0 0.0
    %675 = vmatprep.subr.mxu0 0.0
    %676 = vmatpush1.msra.mxu0 0.0
    %677 = vmatprep.mubr.f32.mxu0 0.0
    %678 = vmatmul.mubr.f32.gmra.mrb[0].mxu0 %v589
    %v679 = vpop.f32.mrb[0].mxu0
    %v680 = vadd.f32 %v611, %v679
    %v681 = vpop.f32.mrb[0].mxu0
    %682 = vdwg.mxu0
    %v683 = vmax.f32 %v680, 0.0
    %v684 = vld [vmem:[#allocation10] sm:$0xff]
    %v685 = vld [vmem:[#allocation10 + $0x8] sm:$0xff]
    %v686 = vld [vmem:[#allocation10 + $0x10] sm:$0xff]
    %v687 = vld [vmem:[#allocation10 + $0x18] sm:$0xff]
    %v688 = vld [vmem:[#allocation10 + $0x20] sm:$0xff]
    %v689 = vld [vmem:[#allocation10 + $0x28] sm:$0xff]
    %v690 = vld [vmem:[#allocation10 + $0x30] sm:$0xff]
    %v691 = vld [vmem:[#allocation10 + $0x38] sm:$0xff]
    %v692 = vld [vmem:[#allocation10 + $0x40] sm:$0xff]
    %v693 = vld [vmem:[#allocation10 + $0x48] sm:$0xff]
    %v694 = vld [vmem:[#allocation10 + $0x50] sm:$0xff]
    %v695 = vld [vmem:[#allocation10 + $0x58] sm:$0xff]
    %v696 = vld [vmem:[#allocation10 + $0x60] sm:$0xff]
    %v697 = vld [vmem:[#allocation10 + $0x68] sm:$0xff]
    %v698 = vld [vmem:[#allocation10 + $0x70] sm:$0xff]
    %v699 = vld [vmem:[#allocation10 + $0x78] sm:$0xff]
    %v700 = vld [vmem:[%s8] sm:$0x1]
    %v702 = vlaneseq
    %v703 = vshrl.u32 %v702, 7
    %v704 = vsub.s32 0, %v703
    %v705 = vrot.slane %v700, %v704
    %707 = vmatprep.subr.mxu0 0.0
    %708 = vmatpush1.msra.mxu0 %v684
    %709 = vmatprep.subr.mxu0 0.0
    %710 = vmatpush1.msra.mxu0 %v685
    %711 = vmatprep.subr.mxu0 0.0
    %712 = vmatpush1.msra.mxu0 %v686
    %713 = vmatprep.subr.mxu0 0.0
    %714 = vmatpush1.msra.mxu0 %v687
    %715 = vmatprep.subr.mxu0 0.0
    %716 = vmatpush1.msra.mxu0 %v688
    %717 = vmatprep.subr.mxu0 0.0
    %718 = vmatpush1.msra.mxu0 %v689
    %719 = vmatprep.subr.mxu0 0.0
    %720 = vmatpush1.msra.mxu0 %v690
    %721 = vmatprep.subr.mxu0 0.0
    %722 = vmatpush1.msra.mxu0 %v691
    %723 = vmatprep.subr.mxu0 0.0
    %724 = vmatpush1.msra.mxu0 %v692
    %725 = vmatprep.subr.mxu0 0.0
    %726 = vmatpush1.msra.mxu0 %v693
    %727 = vmatprep.subr.mxu0 0.0
    %728 = vmatpush1.msra.mxu0 %v694
    %729 = vmatprep.subr.mxu0 0.0
    %730 = vmatpush1.msra.mxu0 %v695
    %731 = vmatprep.subr.mxu0 0.0
    %732 = vmatpush1.msra.mxu0 %v696
    %733 = vmatprep.subr.mxu0 0.0
    %734 = vmatpush1.msra.mxu0 %v697
    %735 = vmatprep.subr.mxu0 0.0
    %736 = vmatpush1.msra.mxu0 %v698
    %737 = vmatprep.subr.mxu0 0.0
    %738 = vmatpush1.msra.mxu0 %v699
    %739 = vmatprep.subr.mxu0 0.0
    %740 = vmatpush1.msra.mxu0 0.0
    %741 = vmatprep.subr.mxu0 0.0
    %742 = vmatpush1.msra.mxu0 0.0
    %743 = vmatprep.subr.mxu0 0.0
    %744 = vmatpush1.msra.mxu0 0.0
    %745 = vmatprep.subr.mxu0 0.0
    %746 = vmatpush1.msra.mxu0 0.0
    %747 = vmatprep.subr.mxu0 0.0
    %748 = vmatpush1.msra.mxu0 0.0
    %749 = vmatprep.subr.mxu0 0.0
    %750 = vmatpush1.msra.mxu0 0.0
    %751 = vmatprep.subr.mxu0 0.0
    %752 = vmatpush1.msra.mxu0 0.0
    %753 = vmatprep.subr.mxu0 0.0
    %754 = vmatpush1.msra.mxu0 0.0
    %755 = vmatprep.subr.mxu0 0.0
    %756 = vmatpush1.msra.mxu0 0.0
    %757 = vmatprep.subr.mxu0 0.0
    %758 = vmatpush1.msra.mxu0 0.0
    %759 = vmatprep.subr.mxu0 0.0
    %760 = vmatpush1.msra.mxu0 0.0
    %761 = vmatprep.subr.mxu0 0.0
    %762 = vmatpush1.msra.mxu0 0.0
    %763 = vmatprep.subr.mxu0 0.0
    %764 = vmatpush1.msra.mxu0 0.0
    %765 = vmatprep.subr.mxu0 0.0
    %766 = vmatpush1.msra.mxu0 0.0
    %767 = vmatprep.subr.mxu0 0.0
    %768 = vmatpush1.msra.mxu0 0.0
    %769 = vmatprep.subr.mxu0 0.0
    %770 = vmatpush1.msra.mxu0 0.0
    %771 = vmatprep.mubr.f32.mxu0 0.0
    %772 = vmatmul.mubr.f32.gmra.mrb[0].mxu0 %v683
    %v773 = vpop.f32.mrb[0].mxu0
    %v774 = vadd.f32 %v705, %v773
    %v775 = vpop.f32.mrb[0].mxu0
    %776 = vdwg.mxu0
    %777 = vmax.xlane.f32.xlu0 %v774
    %v778 = vpop.xlane.xlu0 %777
    %v779 = vsub.f32 %v774, %v778
    %v780 = vmul.f32 %v779, 1.442695
    %v781 = vpow.pop %v780
    %782 = vadd.xlane.f32.xlu0 %v781
    %v783 = vpop.xlane.xlu0 %782
    %v784 = vlog2.pop %v783
    %v785 = vmul.f32 %v784, 0.6931472
    %v786 = vsub.f32 %v779, %v785
    %787 = vst [vmem:[#allocation11] sm:$0xff] %v786
    // Predicated region
    $region58: #{net_forward.1} parent=1 // pred_check
      _
    $region59: #{net_forward.1} parent=1 // pred_check_branch
      %789 = sbr.rel (0) target = $region61
    $region60: #{net_forward.1} parent=1 // pred_region
      %s791 = ssub.s32 128, 128
      %792 = vsyncadd [#allocation4], %s791
      %s794 = sshll.u32 [#allocation11], 4
      %s795 = int_to_ptr.vmem [resolvable:$true] %s794
      %797 = dma.vmem_to_hbm [thread:$0]  %s795, 128, %s9, [#allocation4]
    $region61: #{net_forward.1} parent=1 // pred_fallthru
      _
    // Predicated region
    $region62: #{net_forward.1} parent=1 // pred_check
      _
    $region63: #{net_forward.1} parent=1 // pred_check_branch
      %799 = sbr.rel (0) target = $region65
    $region64: #{net_forward.1} parent=1 // pred_region
      %800 = dma.done [#allocation4], 128
    $region65: #{net_forward.1} parent=1 // pred_fallthru
      _
    %801 = vsyncpa [#allocation3], 1
    %802 = vsyncpa [#allocation6], 1
    %803 = vsyncpa [#allocation9], 1
    %804 = vsyncpa [#allocation4], 1

</llo_original>
